<compile_context>
chip_gen: v7x
topology: tpu7x:2x2x1
jax: 0.10.0
libtpu: 0.0.40
codegen_flags: <defaults>
</compile_context>

<pallas_src>
import functools
import numpy as np
import jax
import jax.numpy as jnp
from jax.experimental import pallas as pl
from jax.experimental.pallas import tpu as pltpu

BN_EPS = 1e-5


# ------------------------------ small helpers ------------------------------

def _round_up(x, m):
    return (x + m - 1) // m * m


def _largest_divisor_leq(n, cap):
    for d in range(min(cap, n), 0, -1):
        if n % d == 0:
            return d
    return 1


# ------------------------------ Pallas kernels ------------------------------

def _conv_bn_kernel(p_ref, w_ref, s_ref, b_ref, o_ref, acc_ref, *, relu):
    """(tm, tk) @ (tk, tn) on the MXU with f32 VMEM accumulator; BN affine
    (+ReLU) epilogue applied on the last K step."""
    k = pl.program_id(3)

    @pl.when(k == 0)
    def _():
        acc_ref[...] = jnp.zeros_like(acc_ref)

    acc_ref[...] += jnp.dot(p_ref[...], w_ref[...],
                            preferred_element_type=jnp.float32)

    @pl.when(k == pl.num_programs(3) - 1)
    def _():
        y = acc_ref[...] * s_ref[...] + b_ref[...]
        if relu:
            y = jnp.maximum(y, 0.0)
        o_ref[...] = y.astype(o_ref.dtype)


def _conv_bn_res_kernel(p_ref, w_ref, s_ref, b_ref, r_ref, o_ref, acc_ref, *,
                        relu):
    """Same as above, fused with the BasicBlock residual add (last K step)."""
    k = pl.program_id(3)

    @pl.when(k == 0)
    def _():
        acc_ref[...] = jnp.zeros_like(acc_ref)

    acc_ref[...] += jnp.dot(p_ref[...], w_ref[...],
                            preferred_element_type=jnp.float32)

    @pl.when(k == pl.num_programs(3) - 1)
    def _():
        y = acc_ref[...] * s_ref[...] + b_ref[...] + r_ref[...]
        if relu:
            y = jnp.maximum(y, 0.0)
        o_ref[...] = y.astype(o_ref.dtype)


def _maxpool_kernel(e_ref, d_ref, o_ref, *, ho, wo):
    """3x3 / stride-2 / pad-1 max pool for one sample.

    e_ref / d_ref are the even / odd columns of the (-inf)-padded activation,
    shape (Hp, wo+1, C) with Hp = 2*ho+2.  All slices/reshapes below are
    stride-free (unit-stride minor slices, major-axis reshapes only)."""
    e = e_ref[...]
    d = d_ref[...]
    c = e.shape[-1]
    # pool along W:  out_w[w'] = max(x[2w'], x[2w'+1], x[2w'+2])
    rw = jnp.maximum(jnp.maximum(e[:, :wo, :], d[:, :wo, :]), e[:, 1:wo + 1, :])
    # pool along H (major axis): split into even/odd rows via free reshapes
    a = rw[0:2 * ho].reshape(ho, 2, wo, c)          # rows 2h', 2h'+1
    b = rw[2:2 * ho + 2].reshape(ho, 2, wo, c)      # rows 2h'+2 (even part)
    o_ref[...] = jnp.maximum(jnp.maximum(a[:, 0], a[:, 1]), b[:, 0])


def _blend_kernel(w_ref, a_ref, b_ref, o_ref):
    """out = w * a + (1 - w) * b ; w is a scalar held in SMEM."""
    w = w_ref[0]
    o_ref[...] = w * a_ref[...] + (1.0 - w) * b_ref[...]


# ------------------------------ Pallas wrappers ------------------------------

def im2col(x, kh, kw, stride, pad):
    n, h, w, c = x.shape
    ho = (h + 2 * pad - kh) // stride + 1
    wo = (w + 2 * pad - kw) // stride + 1
    xp = jnp.pad(x, ((0, 0), (pad, pad), (pad, pad), (0, 0)))
    cols = []
    for i in range(kh):
        for j in range(kw):
            cols.append(xp[:, i:i + stride * ho:stride, j:j + stride * wo:stride, :])
    patches = jnp.stack(cols, axis=3)               # (N, Ho, Wo, KH*KW, C)
    return patches.reshape(n * ho * wo, kh * kw * c), ho, wo


def conv_bn_group(xs, ws, scales, biases, stride, pad, relu=True,
                  residuals=None):
    """G independent conv(bias=False)+foldedBN(+residual,+relu) ops that share
    shapes, executed in ONE tiled Pallas call with a leading branch grid axis.

    xs: list of G NHWC activations (identical shapes)
    ws: list of G (Cout, Cin, KH, KW) weights
    returns: list of G NHWC outputs."""
    G = len(xs)
    n = xs[0].shape[0]
    cout, cin, kh, kw = ws[0].shape

    # im2col patches (bf16 so the materialized matrix is half-size in HBM)
    plist, ho, wo = [], None, None
    for x in xs:
        p, ho, wo = im2col(x.astype(jnp.bfloat16), kh, kw, stride, pad)
        plist.append(p)
    M, K = plist[0].shape

    # tile sizes
    Kp = _round_up(K, 128)
    if M <= 256:
        Mp = _round_up(M, 16)
        tm = Mp
    else:
        tm = 256
        Mp = _round_up(M, tm)
    tn = min(cout, 256)
    units = Kp // 128
    tk = 128 * _largest_divisor_leq(units, 8)       # tk <= 1024, divides Kp
    nk = Kp // tk

    patches = jnp.stack(
        [jnp.pad(p, ((0, Mp - M), (0, Kp - K))) for p in plist])       # (G,Mp,Kp) bf16
    wmat = jnp.stack(
        [jnp.pad(jnp.transpose(w, (2, 3, 1, 0)).reshape(K, cout).astype(jnp.bfloat16),
                 ((0, Kp - K), (0, 0))) for w in ws])                  # (G,Kp,Cout) bf16
    scale = jnp.stack([s.reshape(1, cout).astype(jnp.float32) for s in scales])
    bias = jnp.stack([b.reshape(1, cout).astype(jnp.float32) for b in biases])

    in_specs = [
        pl.BlockSpec((None, tm, tk), lambda g, i, j, k: (g, i, k)),
        pl.BlockSpec((None, tk, tn), lambda g, i, j, k: (g, k, j)),
        pl.BlockSpec((None, 1, tn), lambda g, i, j, k: (g, 0, j)),
        pl.BlockSpec((None, 1, tn), lambda g, i, j, k: (g, 0, j)),
    ]
    args = [patches, wmat, scale, bias]

    if residuals is not None:
        res = jnp.stack(
            [jnp.pad(r.astype(jnp.float32).reshape(M, cout), ((0, Mp - M), (0, 0)))
             for r in residuals])                                      # (G,Mp,Cout) f32
        in_specs.append(pl.BlockSpec((None, tm, tn), lambda g, i, j, k: (g, i, j)))
        args.append(res)
        kernel = functools.partial(_conv_bn_res_kernel, relu=relu)
    else:
        kernel = functools.partial(_conv_bn_kernel, relu=relu)

    out = pl.pallas_call(
        kernel,
        out_shape=jax.ShapeDtypeStruct((G, Mp, cout), jnp.float32),
        grid=(G, Mp // tm, cout // tn, nk),
        in_specs=in_specs,
        out_specs=pl.BlockSpec((None, tm, tn), lambda g, i, j, k: (g, i, j)),
        scratch_shapes=[pltpu.VMEM((tm, tn), jnp.float32)],
        compiler_params=pltpu.CompilerParams(
            dimension_semantics=("parallel", "parallel", "parallel", "arbitrary")),
    )(*args)

    return [out[g, :M, :].reshape(n, ho, wo, cout) for g in range(G)]


def maxpool2d_3x3s2p1(x):
    """MaxPool2d(kernel=3, stride=2, pad=1) in NHWC via a per-sample kernel."""
    n, h, w, c = x.shape
    ho = (h + 2 - 3) // 2 + 1
    wo = (w + 2 - 3) // 2 + 1
    hp = 2 * ho + 2
    wp = 2 * wo + 2
    neg = jnp.asarray(jnp.finfo(x.dtype).min, x.dtype)
    xp = jnp.pad(x, ((0, 0), (1, hp - h - 1), (1, wp - w - 1), (0, 0)),
                 constant_values=neg)
    e = xp[:, :, 0::2, :]                            # (n, hp, wo+1, c)
    d = xp[:, :, 1::2, :]                            # (n, hp, wo+1, c)
    return pl.pallas_call(
        functools.partial(_maxpool_kernel, ho=ho, wo=wo),
        out_shape=jax.ShapeDtypeStruct((n, ho, wo, c), x.dtype),
        grid=(n,),
        in_specs=[pl.BlockSpec((None, hp, wo + 1, c), lambda b: (b, 0, 0, 0)),
                  pl.BlockSpec((None, hp, wo + 1, c), lambda b: (b, 0, 0, 0))],
        out_specs=pl.BlockSpec((None, ho, wo, c), lambda b: (b, 0, 0, 0)),
        compiler_params=pltpu.CompilerParams(dimension_semantics=("parallel",)),
    )(e, d)


def blend(a, b, w):
    """out = w*a + (1-w)*b with a lane-dense (R,128) view and SMEM scalar w."""
    shape = a.shape
    total = a.size
    r0 = _round_up(pl.cdiv(total, 128), 8)
    tr = r0 if r0 <= 512 else 512
    rp = _round_up(r0, tr)
    padded = rp * 128
    a2 = jnp.pad(a.reshape(-1), (0, padded - total)).reshape(rp, 128)
    b2 = jnp.pad(b.reshape(-1), (0, padded - total)).reshape(rp, 128)
    w1 = w.reshape(1).astype(jnp.float32)
    out = pl.pallas_call(
        _blend_kernel,
        out_shape=jax.ShapeDtypeStruct((rp, 128), a.dtype),
        grid=(rp // tr,),
        in_specs=[pl.BlockSpec(memory_space=pltpu.MemorySpace.SMEM),
                  pl.BlockSpec((tr, 128), lambda i: (i, 0)),
                  pl.BlockSpec((tr, 128), lambda i: (i, 0))],
        out_specs=pl.BlockSpec((tr, 128), lambda i: (i, 0)),
        compiler_params=pltpu.CompilerParams(dimension_semantics=("parallel",)),
    )(w1, a2, b2)
    return out.reshape(-1)[:total].reshape(shape)


# ------------------------------ Parameters ------------------------------

class KeyGen:
    def __init__(self, key):
        self.key = key

    def __call__(self):
        self.key, k = jax.random.split(self.key)
        return k


def init_conv(kg, cout, cin, kh, kw):
    fan_in = cin * kh * kw
    return jax.random.normal(kg(), (cout, cin, kh, kw), jnp.float32) / np.sqrt(fan_in)


def init_bn_folded(kg, c):
    gamma = 1.0 + 0.1 * jax.random.normal(kg(), (c,), jnp.float32)
    beta = 0.1 * jax.random.normal(kg(), (c,), jnp.float32)
    mean = 0.1 * jax.random.normal(kg(), (c,), jnp.float32)
    var = 1.0 + 0.1 * jnp.abs(jax.random.normal(kg(), (c,), jnp.float32))
    scale = gamma / jnp.sqrt(var + BN_EPS)
    bias = beta - mean * scale
    return scale.reshape(1, c), bias.reshape(1, c)


def init_block(kg, inplanes, planes, stride):
    p = {'stride': stride}
    p['conv1_w'] = init_conv(kg, planes, inplanes, 3, 3)
    p['bn1_s'], p['bn1_b'] = init_bn_folded(kg, planes)
    p['conv2_w'] = init_conv(kg, planes, planes, 3, 3)
    p['bn2_s'], p['bn2_b'] = init_bn_folded(kg, planes)
    if stride != 1 or inplanes != planes:           # BasicBlock.expansion == 1
        p['ds_w'] = init_conv(kg, planes, inplanes, 1, 1)
        p['ds_s'], p['ds_b'] = init_bn_folded(kg, planes)
    else:
        p['ds_w'] = None
    return p


def init_layer(kg, inplanes, planes, blocks, stride):
    layer = [init_block(kg, inplanes, planes, stride)]
    for _ in range(1, blocks):
        layer.append(init_block(kg, planes, planes, 1))
    return layer


def init_tdn_resnet18(seed=0):
    kg = KeyGen(jax.random.PRNGKey(seed))
    P = {}
    P['conv1_w'] = init_conv(kg, 64, 3, 7, 7)
    P['bn1_s'], P['bn1_b'] = init_bn_folded(kg, 64)
    P['conv1_5_w'] = init_conv(kg, 64, 3, 7, 7)
    P['bn1_5_s'], P['bn1_5_b'] = init_bn_folded(kg, 64)
    layers = [2, 2, 2, 2]                            # resnet_spec[18]
    P['layer1'] = init_layer(kg, 64, 64, layers[0], 1)
    P['resnext_layer1'] = init_layer(kg, 64, 64, layers[0], 1)
    P['layer2'] = init_layer(kg, 64, 128, layers[1], 2)
    P['resnext_layer2'] = init_layer(kg, 64, 128, layers[1], 2)  # inplanes reset to 64
    P['layer3'] = init_layer(kg, 128, 256, layers[2], 2)
    # resnext_layer3 is constructed by the torch module but never used in forward().
    P['layer4'] = init_layer(kg, 256, 512, layers[3], 2)
    # rgb_w3 != '1.0' branch: learnable scalars initialized to 0.6
    P['rgb_w1'] = jnp.full((1, 1), 0.6, jnp.float32)
    P['rgb_w2'] = jnp.full((1, 1), 0.6, jnp.float32)
    P['rgb_w3'] = jnp.full((1, 1), 0.6, jnp.float32)
    return P


# ------------------------------ Forward pass ------------------------------

def basic_block_group(xs, ps):
    """G BasicBlocks (identical shapes, different weights) in grouped calls."""
    stride = ps[0]['stride']
    outs = conv_bn_group(xs,
                         [p['conv1_w'] for p in ps],
                         [p['bn1_s'] for p in ps],
                         [p['bn1_b'] for p in ps],
                         stride=stride, pad=1, relu=True)
    if ps[0]['ds_w'] is not None:
        residuals = conv_bn_group(xs,
                                  [p['ds_w'] for p in ps],
                                  [p['ds_s'] for p in ps],
                                  [p['ds_b'] for p in ps],
                                  stride=stride, pad=0, relu=False)
    else:
        residuals = xs
    # conv2 + bn2 + residual add + relu fused in one tiled Pallas call
    outs = conv_bn_group(outs,
                         [p['conv2_w'] for p in ps],
                         [p['bn2_s'] for p in ps],
                         [p['bn2_b'] for p in ps],
                         stride=1, pad=1, relu=True, residuals=residuals)
    return outs


def layer_group_forward(xs, layers):
    for blocks in zip(*layers):
        xs = basic_block_group(list(xs), list(blocks))
    return list(xs)


def tdn_resnet_forward(P, input_nchw, motion_nchw):
    # NCHW -> NHWC
    x_in = jnp.transpose(input_nchw, (0, 2, 3, 1))
    m_in = jnp.transpose(motion_nchw, (0, 2, 3, 1))

    # Dual stem (RGB conv1 + motion conv1_5) in one grouped Pallas call
    stem_rgb, stem_mot = conv_bn_group(
        [x_in, m_in],
        [P['conv1_w'], P['conv1_5_w']],
        [P['bn1_s'], P['bn1_5_s']],
        [P['bn1_b'], P['bn1_5_b']],
        stride=2, pad=3, relu=True)

    x = maxpool2d_3x3s2p1(stem_rgb)
    x_diff_orig = maxpool2d_3x3s2p1(stem_mot)        # maxpool_diff(1.0/1.0 * x_c5)

    x = blend(x, x_diff_orig, P['rgb_w1'])
    x, x_diff1 = layer_group_forward([x, x_diff_orig],
                                     [P['layer1'], P['resnext_layer1']])

    x = blend(x, x_diff1, P['rgb_w2'])
    x, x_diff2 = layer_group_forward([x, x_diff1],
                                     [P['layer2'], P['resnext_layer2']])

    x = blend(x, x_diff2, P['rgb_w3'])
    (x,) = layer_group_forward([x], [P['layer3']])
    (x,) = layer_group_forward([x], [P['layer4']])

    # NHWC -> NCHW to match the torch module's output convention
    return jnp.transpose(x, (0, 3, 1, 2))


if __name__ == "__main__":
    params = init_tdn_resnet18(seed=0)
    key = jax.random.PRNGKey(0)
    k1, k2 = jax.random.split(key)
    inp = jax.random.normal(k1, (2, 3, 32, 32), jnp.float32)      # NCHW, like torch
    mot = jax.random.normal(k2, (2, 3, 32, 32), jnp.float32)

    out = tdn_resnet_forward(params, inp, mot)
    out = jax.block_until_ready(out)

    assert out.shape == (2, 512, 1, 1), out.shape
    assert bool(jnp.all(jnp.isfinite(out)))
    print("KERNEL_OK")
</pallas_src>

<mosaic_0001>
module attributes {stable_mosaic.version = 11 : i64} {
  func.func @_conv_bn_kernel(%arg0: i32, %arg1: i32, %arg2: i32, %arg3: i32, %arg4: memref<1x256x256xbf16, #tpu.memory_space<vmem>>, %arg5: memref<1x256x64xbf16, #tpu.memory_space<vmem>>, %arg6: memref<1x1x64xf32, #tpu.memory_space<vmem>>, %arg7: memref<1x1x64xf32, #tpu.memory_space<vmem>>, %arg8: memref<1x256x64xf32, #tpu.memory_space<vmem>>, %arg9: memref<256x64xf32, #tpu.memory_space<vmem>>) attributes {dimension_semantics = [#tpu.dimension_semantics<parallel>, #tpu.dimension_semantics<parallel>, #tpu.dimension_semantics<parallel>, #tpu.dimension_semantics<arbitrary>], iteration_bounds = array<i64: 2, 2, 1, 1>, scalar_prefetch = 0 : i64, scratch_operands = 1 : i64, tpu.core_type = #tpu.core_type<tc>, window_params = [{transform_indices = @transform_0, window_bounds = array<i64: 1, 256, 256>}, {transform_indices = @transform_1, window_bounds = array<i64: 1, 256, 64>}, {transform_indices = @transform_2, window_bounds = array<i64: 1, 1, 64>}, {transform_indices = @transform_3, window_bounds = array<i64: 1, 1, 64>}, {transform_indices = @transform_4, window_bounds = array<i64: 1, 256, 64>}]} {
    %c0_i32 = arith.constant 0 : i32
    %0 = arith.cmpi eq, %arg3, %c0_i32 : i32
    %1 = arith.extui %0 : i1 to i32
    %c0_i32_0 = arith.constant 0 : i32
    %2 = arith.cmpi ne, %1, %c0_i32_0 : i32
    scf.if %2 {
      %cst_12 = arith.constant 0.000000e+00 : f32
      %14 = vector.broadcast %cst_12 : f32 to vector<256x64xf32>
      %c0_13 = arith.constant 0 : index
      %c0_14 = arith.constant 0 : index
      %15 = vector.load %arg9[%c0_13, %c0_14] : memref<256x64xf32, #tpu.memory_space<vmem>>, vector<256x64xf32>
      tpu.vector_store %arg9[%c0_13, %c0_14], %14 {strides = array<i32>} : memref<256x64xf32, #tpu.memory_space<vmem>>, vector<256x64xf32>,
    } else {
    }
    %c0 = arith.constant 0 : index
    %c0_1 = arith.constant 0 : index
    %3 = vector.load %arg9[%c0, %c0_1] : memref<256x64xf32, #tpu.memory_space<vmem>>, vector<256x64xf32>
    %c0_2 = arith.constant 0 : index
    %c0_3 = arith.constant 0 : index
    %c0_4 = arith.constant 0 : index
    %4 = vector.load %arg4[%c0_2, %c0_3, %c0_4] : memref<1x256x256xbf16, #tpu.memory_space<vmem>>, vector<1x256x256xbf16>
    %5 = vector.shape_cast %4 : vector<1x256x256xbf16> to vector<256x256xbf16>
    %c0_5 = arith.constant 0 : index
    %c0_6 = arith.constant 0 : index
    %c0_7 = arith.constant 0 : index
    %6 = vector.load %arg5[%c0_5, %c0_6, %c0_7] : memref<1x256x64xbf16, #tpu.memory_space<vmem>>, vector<1x256x64xbf16>
    %7 = vector.shape_cast %6 : vector<1x256x64xbf16> to vector<256x64xbf16>
    %cst = arith.constant dense<0.000000e+00> : vector<256x64xf32>
    %8 = tpu.matmul %5, %7, %cst {dimension_numbers = #tpu.dot_dimension_numbers<[1], [0], [0], [1], [0, 0, 1, 1], [], []>} : vector<256x256xbf16>, vector<256x64xbf16>, vector<256x64xf32> -> vector<256x64xf32>
    %9 = arith.addf %3, %8 : vector<256x64xf32>
    %c0_8 = arith.constant 0 : index
    %c0_9 = arith.constant 0 : index
    %10 = vector.load %arg9[%c0_8, %c0_9] : memref<256x64xf32, #tpu.memory_space<vmem>>, vector<256x64xf32>
    tpu.vector_store %arg9[%c0_8, %c0_9], %9 {strides = array<i32>} : memref<256x64xf32, #tpu.memory_space<vmem>>, vector<256x64xf32>,
    %c0_i32_10 = arith.constant 0 : i32
    %11 = arith.cmpi eq, %arg3, %c0_i32_10 : i32
    %12 = arith.extui %11 : i1 to i32
    %c0_i32_11 = arith.constant 0 : i32
    %13 = arith.cmpi ne, %12, %c0_i32_11 : i32
    scf.if %13 {
      %c0_12 = arith.constant 0 : index
      %c0_13 = arith.constant 0 : index
      %14 = vector.load %arg9[%c0_12, %c0_13] : memref<256x64xf32, #tpu.memory_space<vmem>>, vector<256x64xf32>
      %c0_14 = arith.constant 0 : index
      %c0_15 = arith.constant 0 : index
      %c0_16 = arith.constant 0 : index
      %15 = vector.load %arg6[%c0_14, %c0_15, %c0_16] : memref<1x1x64xf32, #tpu.memory_space<vmem>>, vector<1x1x64xf32>
      %16 = vector.shape_cast %15 : vector<1x1x64xf32> to vector<1x64xf32>
      %17 = vector.broadcast %16 : vector<1x64xf32> to vector<256x64xf32>
      %18 = arith.mulf %14, %17 : vector<256x64xf32>
      %c0_17 = arith.constant 0 : index
      %c0_18 = arith.constant 0 : index
      %c0_19 = arith.constant 0 : index
      %19 = vector.load %arg7[%c0_17, %c0_18, %c0_19] : memref<1x1x64xf32, #tpu.memory_space<vmem>>, vector<1x1x64xf32>
      %20 = vector.shape_cast %19 : vector<1x1x64xf32> to vector<1x64xf32>
      %21 = vector.broadcast %20 : vector<1x64xf32> to vector<256x64xf32>
      %22 = arith.addf %18, %21 : vector<256x64xf32>
      %cst_20 = arith.constant 0.000000e+00 : f32
      %23 = vector.broadcast %cst_20 : f32 to vector<256x64xf32>
      %24 = arith.maximumf %22, %23 : vector<256x64xf32>
      %c0_21 = arith.constant 0 : index
      %c0_22 = arith.constant 0 : index
      %c0_23 = arith.constant 0 : index
      %25 = vector.load %arg8[%c0_21, %c0_22, %c0_23] : memref<1x256x64xf32, #tpu.memory_space<vmem>>, vector<1x256x64xf32>
      %26 = vector.shape_cast %25 : vector<1x256x64xf32> to vector<256x64xf32>
      %27 = vector.shape_cast %24 : vector<256x64xf32> to vector<1x256x64xf32>
      tpu.vector_store %arg8[%c0_21, %c0_22, %c0_23], %27 {strides = array<i32>} : memref<1x256x64xf32, #tpu.memory_space<vmem>>, vector<1x256x64xf32>,
    } else {
    }
    return
  }
  func.func @transform_0(%arg0: i32, %arg1: i32, %arg2: i32, %arg3: i32) -> (i32, i32, i32) {
    %c0_i32 = arith.constant 0 : i32
    return %arg0, %arg1, %arg3 : i32, i32, i32
  }
  func.func @transform_1(%arg0: i32, %arg1: i32, %arg2: i32, %arg3: i32) -> (i32, i32, i32) {
    %c0_i32 = arith.constant 0 : i32
    return %arg0, %arg3, %arg2 : i32, i32, i32
  }
  func.func @transform_2(%arg0: i32, %arg1: i32, %arg2: i32, %arg3: i32) -> (i32, i32, i32) {
    %c0_i32 = arith.constant 0 : i32
    %c0_i32_0 = arith.constant 0 : i32
    return %arg0, %c0_i32, %arg2 : i32, i32, i32
  }
  func.func @transform_3(%arg0: i32, %arg1: i32, %arg2: i32, %arg3: i32) -> (i32, i32, i32) {
    %c0_i32 = arith.constant 0 : i32
    %c0_i32_0 = arith.constant 0 : i32
    return %arg0, %c0_i32, %arg2 : i32, i32, i32
  }
  func.func @transform_4(%arg0: i32, %arg1: i32, %arg2: i32, %arg3: i32) -> (i32, i32, i32) {
    %c0_i32 = arith.constant 0 : i32
    return %arg0, %arg1, %arg2 : i32, i32, i32
  }
}

</mosaic_0001>

<llo_original>
// kernel: tpu_custom_call.1
$region0: #{tpu_custom_call.1}
  #allocation0 [shape = 'u32[]', space=smem, size = 0x4, offset = 0x4, fixed_abs, tag = 'smem constant byte address 0x4 - core index']
  #allocation1 [shape = 'u32[144,128]{1,0:T(1,128)}', space=vmem, size = 0x12000, scoped, tag = 'internal scratch']
  #allocation2 [shape = 'f32[256,64]{1,0:T(8,128)}', space=vmem, size = 0x20000, scoped, tag = 'scratch operand']
  %s0 = inlined_call_operand.hbm [shape: bf16[2,512,256], index: 0, kind: input, shape index: {}]
  %s1 = inlined_call_operand.vmem [shape: bf16[2,256,64], index: 1, kind: input, shape index: {}]
  %s2 = inlined_call_operand.vmem [shape: f32[2,1,64], index: 2, kind: input, shape index: {}]
  %s3 = inlined_call_operand.vmem [shape: f32[2,1,64], index: 3, kind: input, shape index: {}]
  %s4 = inlined_call_operand.vmem [shape: f32[2,512,64], index: 4, kind: output, shape index: {}]
  %s5 = sld [smem:[#allocation0]]
  $region61: #{tpu_custom_call.1} parent=0
    _
  %s7 = ssub.s32 1, %s5
  %s8 = scalar_select 0, %s7, %s5
  $region1: #{tpu_custom_call.1} parent=0
    #allocation3 [shape = 'u8[262144]{0}', space=vmem, size = 0x40000, scoped, tag = 'input window, operand 0']
    #allocation4 [shape = 's32[2]{0}', space=sflag, size = 0x8, scoped, tag = 'scoped memory for tpu_custom_call.1']
    %9 = vsyncpa [#allocation4], 0
    %s10 = scalar_lea.sflag [#allocation4], 1
    %11 = vsyncpa %s10, 0
    loop: start=0, step=1, limit=6
    $region2: #{tpu_custom_call.1} parent=1 // loop_pre_header
      _
    $region3: #{tpu_custom_call.1} parent=1 // loop_header
      %s13 = sphi 0, %s17
      %p14 = scmp.ge.s32.totalorder %s13, 6
      %s20 = sphi 0, %s46
      %s21 = sphi 0, %s42
      %s22 = sphi 0, %s38
      %s23 = sphi 0, %s34
      %s24 = sphi 0, %s20
      %s25 = sphi 0, %s21
      %s26 = sphi 0, %s22
      %s27 = sphi 0, %s23
      %s28 = sphi 0, %s24
      %s29 = sphi 0, %s25
      %s30 = sphi 0, %s26
      %s31 = sphi 0, %s27
      %s53 = sphi 0, %s55
      %s56 = sphi 0, %s53
      %s57 = sphi 0, %s56
      %s73 = sphi 0, %s57
      %s83 = sphi 0, %s85
      %s86 = sphi 0, %s83
      %s87 = sphi 0, %s86
      %s103 = sphi 0, %s87
      %s111 = sphi 0, %s113
      %s114 = sphi 0, %s111
      %s115 = sphi 0, %s114
      %s131 = sphi 0, %s115
      %s139 = sphi 0, %s141
      %s142 = sphi 0, %s139
      %s143 = sphi 0, %s142
      %s159 = sphi 0, %s143
      %s169 = sphi 0, %s171
      %s172 = sphi 0, %s169
      %s173 = sphi 0, %s172
      %s189 = sphi 0, %s173
    $region4: #{tpu_custom_call.1} parent=1 // loop_header_branch
      %16 = sbr.rel (%p14) target = $region8
    $region5: #{tpu_custom_call.1} parent=1 // loop_body
      %s18 = ssub.s32 %s13, 1
      %s19 = ssub.s32 %s13, 2
      %s32 = sadd.s32 1, %s23
      %p33 = scmp.ge.s32.totalorder %s32, 1
      %s34 = scalar_select %p33, 0, %s32
      %s35 = sadd.s32 1, %s22
      %s36 = scalar_select %p33, %s35, %s22
      %p37 = scmp.ge.s32.totalorder %s36, 1
      %s38 = scalar_select %p37, 0, %s36
      %s39 = sadd.s32 1, %s21
      %s40 = scalar_select %p37, %s39, %s21
      %p41 = scmp.ge.s32.totalorder %s40, 2
      %s42 = scalar_select %p41, 0, %s40
      %s43 = sadd.s32 1, %s20
      %s44 = scalar_select %p41, %s43, %s20
      %p45 = scmp.ge.s32.totalorder %s44, 2
      %s46 = scalar_select %p45, 0, %s44
      %s47 = ssub.s32 %s20, %s46
      %s48 = ssub.s32 %s21, %s42
      %s49 = sor.u32 %s47, %s48
      %s50 = ssub.s32 %s23, %s34
      %s51 = sor.u32 %s49, %s50
      %p52 = scmp.eq.s32.totalorder %s51, 0
      %s54 = sadd.s32 %s53, 1
      %s55 = scalar_select %p52, %s53, %s54
      %p58 = pneg %p52
      %p59 = scmp.eq.s32.totalorder %s13, 3
      %p60 = por %p58, %p59
      %p61 = scmp.ne.s32.totalorder %s53, %s56
      %p62 = scmp.eq.s32.totalorder %s13, 0
      %p63 = por %p61, %p62
      %p64 = scmp.ne.s32.totalorder %s53, %s56
      %p65 = scmp.eq.s32.totalorder %s18, 3
      %p66 = por %p64, %p65
      %p67 = scmp.ne.s32.totalorder %s56, %s57
      %p68 = scmp.eq.s32.totalorder %s18, 0
      %p69 = por %p67, %p68
      %p70 = scmp.ne.s32.totalorder %s56, %s57
      %p71 = scmp.eq.s32.totalorder %s19, 3
      %p72 = por %p70, %p71
      %p74 = scmp.ne.s32.totalorder %s57, %s73
      %p75 = scmp.eq.s32.totalorder %s19, 0
      %p76 = por %p74, %p75
      %s77 = ssub.s32 %s20, %s46
      %s78 = ssub.s32 %s23, %s34
      %s79 = sor.u32 %s77, %s78
      %s80 = ssub.s32 %s22, %s38
      %s81 = sor.u32 %s79, %s80
      %p82 = scmp.eq.s32.totalorder %s81, 0
      %s84 = sadd.s32 %s83, 1
      %s85 = scalar_select %p82, %s83, %s84
      %p88 = pneg %p82
      %p89 = scmp.eq.s32.totalorder %s13, 3
      %p90 = por %p88, %p89
      %p91 = scmp.ne.s32.totalorder %s83, %s86
      %p92 = scmp.eq.s32.totalorder %s13, 0
      %p93 = por %p91, %p92
      %p94 = scmp.ne.s32.totalorder %s83, %s86
      %p95 = scmp.eq.s32.totalorder %s18, 3
      %p96 = por %p94, %p95
      %p97 = scmp.ne.s32.totalorder %s86, %s87
      %p98 = scmp.eq.s32.totalorder %s18, 0
      %p99 = por %p97, %p98
      %p100 = scmp.ne.s32.totalorder %s86, %s87
      %p101 = scmp.eq.s32.totalorder %s19, 3
      %p102 = por %p100, %p101
      %p104 = scmp.ne.s32.totalorder %s87, %s103
      %p105 = scmp.eq.s32.totalorder %s19, 0
      %p106 = por %p104, %p105
      %s107 = ssub.s32 %s20, %s46
      %s108 = ssub.s32 %s22, %s38
      %s109 = sor.u32 %s107, %s108
      %p110 = scmp.eq.s32.totalorder %s109, 0
      %s112 = sadd.s32 %s111, 1
      %s113 = scalar_select %p110, %s111, %s112
      %p116 = pneg %p110
      %p117 = scmp.eq.s32.totalorder %s13, 3
      %p118 = por %p116, %p117
      %p119 = scmp.ne.s32.totalorder %s111, %s114
      %p120 = scmp.eq.s32.totalorder %s13, 0
      %p121 = por %p119, %p120
      %p122 = scmp.ne.s32.totalorder %s111, %s114
      %p123 = scmp.eq.s32.totalorder %s18, 3
      %p124 = por %p122, %p123
      %p125 = scmp.ne.s32.totalorder %s114, %s115
      %p126 = scmp.eq.s32.totalorder %s18, 0
      %p127 = por %p125, %p126
      %p128 = scmp.ne.s32.totalorder %s114, %s115
      %p129 = scmp.eq.s32.totalorder %s19, 3
      %p130 = por %p128, %p129
      %p132 = scmp.ne.s32.totalorder %s115, %s131
      %p133 = scmp.eq.s32.totalorder %s19, 0
      %p134 = por %p132, %p133
      %s135 = ssub.s32 %s20, %s46
      %s136 = ssub.s32 %s22, %s38
      %s137 = sor.u32 %s135, %s136
      %p138 = scmp.eq.s32.totalorder %s137, 0
      %s140 = sadd.s32 %s139, 1
      %s141 = scalar_select %p138, %s139, %s140
      %p144 = pneg %p138
      %p145 = scmp.eq.s32.totalorder %s13, 3
      %p146 = por %p144, %p145
      %p147 = scmp.ne.s32.totalorder %s139, %s142
      %p148 = scmp.eq.s32.totalorder %s13, 0
      %p149 = por %p147, %p148
      %p150 = scmp.ne.s32.totalorder %s139, %s142
      %p151 = scmp.eq.s32.totalorder %s18, 3
      %p152 = por %p150, %p151
      %p153 = scmp.ne.s32.totalorder %s142, %s143
      %p154 = scmp.eq.s32.totalorder %s18, 0
      %p155 = por %p153, %p154
      %p156 = scmp.ne.s32.totalorder %s142, %s143
      %p157 = scmp.eq.s32.totalorder %s19, 3
      %p158 = por %p156, %p157
      %p160 = scmp.ne.s32.totalorder %s143, %s159
      %p161 = scmp.eq.s32.totalorder %s19, 0
      %p162 = por %p160, %p161
      %s163 = ssub.s32 %s20, %s46
      %s164 = ssub.s32 %s21, %s42
      %s165 = sor.u32 %s163, %s164
      %s166 = ssub.s32 %s22, %s38
      %s167 = sor.u32 %s165, %s166
      %p168 = scmp.eq.s32.totalorder %s167, 0
      %s170 = sadd.s32 %s169, 1
      %s171 = scalar_select %p168, %s169, %s170
      %p174 = pneg %p168
      %p175 = scmp.eq.s32.totalorder %s13, 3
      %p176 = por %p174, %p175
      %p177 = scmp.ne.s32.totalorder %s169, %s172
      %p178 = scmp.eq.s32.totalorder %s13, 0
      %p179 = por %p177, %p178
      %p180 = scmp.ne.s32.totalorder %s169, %s172
      %p181 = scmp.eq.s32.totalorder %s18, 3
      %p182 = por %p180, %p181
      %p183 = scmp.ne.s32.totalorder %s172, %s173
      %p184 = scmp.eq.s32.totalorder %s18, 0
      %p185 = por %p183, %p184
      %p186 = scmp.ne.s32.totalorder %s172, %s173
      %p187 = scmp.eq.s32.totalorder %s19, 3
      %p188 = por %p186, %p187
      %p190 = scmp.ne.s32.totalorder %s173, %s189
      %p191 = scmp.eq.s32.totalorder %s19, 0
      %p192 = por %p190, %p191
      %p193 = scmp.le.s32.totalorder 1, %s13
      %p194 = scmp.lt.s32.totalorder %s13, 5
      %p195 = pnand %p193, %p194
      %p196 = pneg %p195
      // Predicated region
      $region9: #{tpu_custom_call.1} parent=5 // pred_check
        _
      $region10: #{tpu_custom_call.1} parent=5 // pred_check_branch
        %198 = sbr.rel (%p195) target = $region12
      $region11: #{tpu_custom_call.1} parent=5 // pred_region
        %s199 = ssub.s32 %s13, 1
      $region12: #{tpu_custom_call.1} parent=5 // pred_fallthru
        _
      %p200 = scmp.lt.s32.totalorder %s13, 4
      // Predicated region
      $region13: #{tpu_custom_call.1} parent=5 // pred_check
        %p201 = pneg %p200
      $region14: #{tpu_custom_call.1} parent=5 // pred_check_branch
        %203 = sbr.rel (%p201) target = $region16
      $region15: #{tpu_custom_call.1} parent=5 // pred_region
        // Predicated region
        $region17: #{tpu_custom_call.1} parent=15 // pred_check
          %p204 = pneg %p63
        $region18: #{tpu_custom_call.1} parent=15 // pred_check_branch
          %206 = sbr.rel (%p204) target = $region20
        $region19: #{tpu_custom_call.1} parent=15 // pred_region
          %s207 = sand.u32 %s53, 1
          %s208 = scalar_lea.sflag [#allocation4], %s207
          %s209 = sand.u32 %s53, 1
          %s210 = smul.addr %s209, 256
          %s211 = scalar_lea.vmem [#allocation3], %s210
          %s212 = smul.u32 32, %s21
          %s213 = smul.u32 2, %s23
          %s215 = ssub.s32 4096, 4096
          %216 = vsyncadd %s208, %s215
          %s217 = smul.addr %s212, 2
          %s218 = sadd.s32 %s213, %s217
          %s219 = smul.addr %s20, 128
          %s220 = sadd.s32 %s218, %s219
          %s221 = smul.addr %s220, 64
          %s222 = scalar_lea.hbm %s0, %s221
          %s223 = sshll.u32 %s211, 4
          %s224 = int_to_ptr.vmem [resolvable:$true] %s223
          %229 = dma.hbm_to_vmem [thread:$0]  %s222, 4096, %s224, %s208, 128, 128, 8
        $region20: #{tpu_custom_call.1} parent=15 // pred_fallthru
          _
        // Predicated region
        $region21: #{tpu_custom_call.1} parent=15 // pred_check
          %p230 = pneg %p93
        $region22: #{tpu_custom_call.1} parent=15 // pred_check_branch
          %232 = sbr.rel (%p230) target = $region24
        $region23: #{tpu_custom_call.1} parent=15 // pred_region
          %s233 = smul.u32 32, %s23
          %p234 = scmp.lt.s32.totalorder %s20, 1
          %s235 = scalar_select %p234, %s20, 1
          %p236 = scmp.lt.s32.totalorder %s233, 31
          %s237 = scalar_select %p236, %s233, 31
          %p238 = scmp.lt.s32.totalorder %s22, 0
          %s239 = scalar_select %p238, %s22, 0
          %s240 = sadd.s32 %s239, %s237
          %s241 = smul.addr %s235, 32
          %s242 = sadd.s32 %s240, %s241
          %s243 = smul.addr %s242, 4
          %s244 = scalar_lea.vmem %s1, %s243
          %s245 = smul.u32 32, %s23
        $region24: #{tpu_custom_call.1} parent=15 // pred_fallthru
          _
        // Predicated region
        $region25: #{tpu_custom_call.1} parent=15 // pred_check
          %p246 = pneg %p121
        $region26: #{tpu_custom_call.1} parent=15 // pred_check_branch
          %248 = sbr.rel (%p246) target = $region28
        $region27: #{tpu_custom_call.1} parent=15 // pred_region
          %p249 = scmp.lt.s32.totalorder %s20, 1
          %s250 = scalar_select %p249, %s20, 1
          %p251 = scmp.lt.s32.totalorder %s22, 0
          %s252 = scalar_select %p251, %s22, 0
          %s253 = sadd.s32 %s252, %s250
          %s254 = scalar_lea.vmem %s2, %s253
        $region28: #{tpu_custom_call.1} parent=15 // pred_fallthru
          _
        // Predicated region
        $region29: #{tpu_custom_call.1} parent=15 // pred_check
          %p255 = pneg %p149
        $region30: #{tpu_custom_call.1} parent=15 // pred_check_branch
          %257 = sbr.rel (%p255) target = $region32
        $region31: #{tpu_custom_call.1} parent=15 // pred_region
          %p258 = scmp.lt.s32.totalorder %s20, 1
          %s259 = scalar_select %p258, %s20, 1
          %p260 = scmp.lt.s32.totalorder %s22, 0
          %s261 = scalar_select %p260, %s22, 0
          %s262 = sadd.s32 %s261, %s259
          %s263 = scalar_lea.vmem %s3, %s262
        $region32: #{tpu_custom_call.1} parent=15 // pred_fallthru
          _
      $region16: #{tpu_custom_call.1} parent=5 // pred_fallthru
        _
      %p264 = scmp.le.s32.totalorder 1, %s13
      %p265 = scmp.lt.s32.totalorder %s13, 5
      %p266 = pnand %p264, %p265
      %p267 = pneg %p266
      // Predicated region
      $region33: #{tpu_custom_call.1} parent=5 // pred_check
        _
      $region34: #{tpu_custom_call.1} parent=5 // pred_check_branch
        %269 = sbr.rel (%p266) target = $region36
      $region35: #{tpu_custom_call.1} parent=5 // pred_region
        %s270 = ssub.s32 %s13, 1
        %s271 = sand.u32 %s56, 1
        %s272 = scalar_lea.sflag [#allocation4], %s271
        %s273 = sand.u32 %s56, 1
        %s274 = smul.addr %s273, 256
        %s275 = scalar_lea.vmem [#allocation3], %s274
        // Predicated region
        $region37: #{tpu_custom_call.1} parent=35 // pred_check
          %p276 = pneg %p69
        $region38: #{tpu_custom_call.1} parent=35 // pred_check_branch
          %278 = sbr.rel (%p276) target = $region40
        $region39: #{tpu_custom_call.1} parent=35 // pred_region
          %279 = dma.done %s272, 4096
        $region40: #{tpu_custom_call.1} parent=35 // pred_fallthru
          _
        %s280 = sand.u32 %s56, 1
        %s281 = scalar_lea.sflag [#allocation4], %s280
        %s282 = sand.u32 %s56, 1
        %s283 = smul.addr %s282, 256
        %s284 = scalar_lea.vmem [#allocation3], %s283
        %p285 = pneg %p69
        %p286 = pneg %p66
        %s287 = smul.u32 32, %s27
        %p288 = scmp.lt.s32.totalorder %s24, 1
        %s289 = scalar_select %p288, %s24, 1
        %p290 = scmp.lt.s32.totalorder %s287, 31
        %s291 = scalar_select %p290, %s287, 31
        %p292 = scmp.lt.s32.totalorder %s26, 0
        %s293 = scalar_select %p292, %s26, 0
        %s294 = sadd.s32 %s293, %s291
        %s295 = smul.addr %s289, 32
        %s296 = sadd.s32 %s294, %s295
        %s297 = smul.addr %s296, 4
        %s298 = scalar_lea.vmem %s1, %s297
        %p299 = pneg %p99
        %p300 = pneg %p96
        %p301 = scmp.lt.s32.totalorder %s24, 1
        %s302 = scalar_select %p301, %s24, 1
        %p303 = scmp.lt.s32.totalorder %s26, 0
        %s304 = scalar_select %p303, %s26, 0
        %s305 = sadd.s32 %s304, %s302
        %s306 = scalar_lea.vmem %s2, %s305
        %p307 = pneg %p127
        %p308 = pneg %p124
        %p309 = scmp.lt.s32.totalorder %s24, 1
        %s310 = scalar_select %p309, %s24, 1
        %p311 = scmp.lt.s32.totalorder %s26, 0
        %s312 = scalar_select %p311, %s26, 0
        %s313 = sadd.s32 %s312, %s310
        %s314 = scalar_lea.vmem %s3, %s313
        %p315 = pneg %p155
        %p316 = pneg %p152
        %p317 = pneg %p185
        %p318 = pneg %p182
        %s319 = smul.u32 32, %s25
        %p320 = scmp.lt.s32.totalorder %s24, 1
        %s321 = scalar_select %p320, %s24, 1
        %p322 = scmp.lt.s32.totalorder %s319, 63
        %s323 = scalar_select %p322, %s319, 63
        %p324 = scmp.lt.s32.totalorder %s26, 0
        %s325 = scalar_select %p324, %s26, 0
        %s326 = sadd.s32 %s325, %s323
        %s327 = smul.addr %s321, 64
        %s328 = sadd.s32 %s326, %s327
        %s329 = smul.addr %s328, 8
        %s330 = scalar_lea.vmem %s4, %s329
        %s331 = smul.u32 32, %s25
        %s332 = smul.u32 2, %s27
        %s333 = smul.u32 32, %s27
        %p334 = scmp.lt.s32.totalorder %s24, 1
        %s335 = scalar_select %p334, %s24, 1
        %p336 = scmp.lt.s32.totalorder %s333, 31
        %s337 = scalar_select %p336, %s333, 31
        %p338 = scmp.lt.s32.totalorder %s26, 0
        %s339 = scalar_select %p338, %s26, 0
        %s340 = sadd.s32 %s339, %s337
        %s341 = smul.addr %s335, 32
        %s342 = sadd.s32 %s340, %s341
        %s343 = smul.addr %s342, 4
        %s344 = scalar_lea.vmem %s1, %s343
        %s345 = smul.u32 32, %s27
        %p346 = scmp.lt.s32.totalorder %s24, 1
        %s347 = scalar_select %p346, %s24, 1
        %p348 = scmp.lt.s32.totalorder %s26, 0
        %s349 = scalar_select %p348, %s26, 0
        %s350 = sadd.s32 %s349, %s347
        %s351 = scalar_lea.vmem %s2, %s350
        %p352 = scmp.lt.s32.totalorder %s24, 1
        %s353 = scalar_select %p352, %s24, 1
        %p354 = scmp.lt.s32.totalorder %s26, 0
        %s355 = scalar_select %p354, %s26, 0
        %s356 = sadd.s32 %s355, %s353
        %s357 = scalar_lea.vmem %s3, %s356
        %s358 = smul.u32 32, %s25
        %p359 = scmp.lt.s32.totalorder %s24, 1
        %s360 = scalar_select %p359, %s24, 1
        %p361 = scmp.lt.s32.totalorder %s358, 63
        %s362 = scalar_select %p361, %s358, 63
        %p363 = scmp.lt.s32.totalorder %s26, 0
        %s364 = scalar_select %p363, %s26, 0
        %s365 = sadd.s32 %s364, %s362
        %s366 = smul.addr %s360, 64
        %s367 = sadd.s32 %s365, %s366
        %s368 = smul.addr %s367, 8
        %s369 = scalar_lea.vmem %s4, %s368
        %s370 = smul.u32 32, %s25
        %p372 = scmp.eq.s32.totalorder %s27, 0
        // Predicated region
        $region41: #{tpu_custom_call.1} parent=35 // pred_check
          %p373 = pneg %p372
        $region42: #{tpu_custom_call.1} parent=35 // pred_check_branch
          %375 = sbr.rel (%p373) target = $region44
        $region43: #{tpu_custom_call.1} parent=35 // pred_region
          %vm376 = vcmask 523264
          %377 = vst.msk [vmem:[#allocation2] sm:$0xff] %vm376, 0.0
          %378 = vst.msk [vmem:[#allocation2 + $0x8] sm:$0xff] %vm376, 0.0
          %379 = vst.msk [vmem:[#allocation2 + $0x10] sm:$0xff] %vm376, 0.0
          %380 = vst.msk [vmem:[#allocation2 + $0x18] sm:$0xff] %vm376, 0.0
          %381 = vst.msk [vmem:[#allocation2 + $0x20] sm:$0xff] %vm376, 0.0
          %382 = vst.msk [vmem:[#allocation2 + $0x28] sm:$0xff] %vm376, 0.0
          %383 = vst.msk [vmem:[#allocation2 + $0x30] sm:$0xff] %vm376, 0.0
          %384 = vst.msk [vmem:[#allocation2 + $0x38] sm:$0xff] %vm376, 0.0
          %385 = vst.msk [vmem:[#allocation2 + $0x40] sm:$0xff] %vm376, 0.0
          %386 = vst.msk [vmem:[#allocation2 + $0x48] sm:$0xff] %vm376, 0.0
          %387 = vst.msk [vmem:[#allocation2 + $0x50] sm:$0xff] %vm376, 0.0
          %388 = vst.msk [vmem:[#allocation2 + $0x58] sm:$0xff] %vm376, 0.0
          %389 = vst.msk [vmem:[#allocation2 + $0x60] sm:$0xff] %vm376, 0.0
          %390 = vst.msk [vmem:[#allocation2 + $0x68] sm:$0xff] %vm376, 0.0
          %391 = vst.msk [vmem:[#allocation2 + $0x70] sm:$0xff] %vm376, 0.0
          %392 = vst.msk [vmem:[#allocation2 + $0x78] sm:$0xff] %vm376, 0.0
          %393 = vst.msk [vmem:[#allocation2 + $0x80] sm:$0xff] %vm376, 0.0
          %394 = vst.msk [vmem:[#allocation2 + $0x88] sm:$0xff] %vm376, 0.0
          %395 = vst.msk [vmem:[#allocation2 + $0x90] sm:$0xff] %vm376, 0.0
          %396 = vst.msk [vmem:[#allocation2 + $0x98] sm:$0xff] %vm376, 0.0
          %397 = vst.msk [vmem:[#allocation2 + $0xa0] sm:$0xff] %vm376, 0.0
          %398 = vst.msk [vmem:[#allocation2 + $0xa8] sm:$0xff] %vm376, 0.0
          %399 = vst.msk [vmem:[#allocation2 + $0xb0] sm:$0xff] %vm376, 0.0
          %400 = vst.msk [vmem:[#allocation2 + $0xb8] sm:$0xff] %vm376, 0.0
          %401 = vst.msk [vmem:[#allocation2 + $0xc0] sm:$0xff] %vm376, 0.0
          %402 = vst.msk [vmem:[#allocation2 + $0xc8] sm:$0xff] %vm376, 0.0
          %403 = vst.msk [vmem:[#allocation2 + $0xd0] sm:$0xff] %vm376, 0.0
          %404 = vst.msk [vmem:[#allocation2 + $0xd8] sm:$0xff] %vm376, 0.0
          %405 = vst.msk [vmem:[#allocation2 + $0xe0] sm:$0xff] %vm376, 0.0
          %406 = vst.msk [vmem:[#allocation2 + $0xe8] sm:$0xff] %vm376, 0.0
          %407 = vst.msk [vmem:[#allocation2 + $0xf0] sm:$0xff] %vm376, 0.0
          %408 = vst.msk [vmem:[#allocation2 + $0xf8] sm:$0xff] %vm376, 0.0
        $region44: #{tpu_custom_call.1} parent=35 // pred_fallthru
          _
        %v409 = vld [vmem:[#allocation2] sm:$0xff]
        %v410 = vld [vmem:[#allocation2 + $0x8] sm:$0xff]
        %v411 = vld [vmem:[#allocation2 + $0x10] sm:$0xff]
        %v412 = vld [vmem:[#allocation2 + $0x18] sm:$0xff]
        %v413 = vld [vmem:[#allocation2 + $0x20] sm:$0xff]
        %v414 = vld [vmem:[#allocation2 + $0x28] sm:$0xff]
        %v415 = vld [vmem:[#allocation2 + $0x30] sm:$0xff]
        %v416 = vld [vmem:[#allocation2 + $0x38] sm:$0xff]
        %v417 = vld [vmem:[#allocation2 + $0x40] sm:$0xff]
        %v418 = vld [vmem:[#allocation2 + $0x48] sm:$0xff]
        %v419 = vld [vmem:[#allocation2 + $0x50] sm:$0xff]
        %v420 = vld [vmem:[#allocation2 + $0x58] sm:$0xff]
        %v421 = vld [vmem:[#allocation2 + $0x60] sm:$0xff]
        %v422 = vld [vmem:[#allocation2 + $0x68] sm:$0xff]
        %v423 = vld [vmem:[#allocation2 + $0x70] sm:$0xff]
        %v424 = vld [vmem:[#allocation2 + $0x78] sm:$0xff]
        %v425 = vld [vmem:[#allocation2 + $0x80] sm:$0xff]
        %v426 = vld [vmem:[#allocation2 + $0x88] sm:$0xff]
        %v427 = vld [vmem:[#allocation2 + $0x90] sm:$0xff]
        %v428 = vld [vmem:[#allocation2 + $0x98] sm:$0xff]
        %v429 = vld [vmem:[#allocation2 + $0xa0] sm:$0xff]
        %v430 = vld [vmem:[#allocation2 + $0xa8] sm:$0xff]
        %v431 = vld [vmem:[#allocation2 + $0xb0] sm:$0xff]
        %v432 = vld [vmem:[#allocation2 + $0xb8] sm:$0xff]
        %v433 = vld [vmem:[#allocation2 + $0xc0] sm:$0xff]
        %v434 = vld [vmem:[#allocation2 + $0xc8] sm:$0xff]
        %v435 = vld [vmem:[#allocation2 + $0xd0] sm:$0xff]
        %v436 = vld [vmem:[#allocation2 + $0xd8] sm:$0xff]
        %v437 = vld [vmem:[#allocation2 + $0xe0] sm:$0xff]
        %v438 = vld [vmem:[#allocation2 + $0xe8] sm:$0xff]
        %v439 = vld [vmem:[#allocation2 + $0xf0] sm:$0xff]
        %v440 = vld [vmem:[#allocation2 + $0xf8] sm:$0xff]
        %v441 = vld [vmem:[%s275] sm:$0xff]
        %v442 = vld [vmem:[%s275 + $0x8] sm:$0xff]
        %v443 = vld [vmem:[%s275 + $0x10] sm:$0xff]
        %v444 = vld [vmem:[%s275 + $0x18] sm:$0xff]
        %v445 = vld [vmem:[%s275 + $0x20] sm:$0xff]
        %v446 = vld [vmem:[%s275 + $0x28] sm:$0xff]
        %v447 = vld [vmem:[%s275 + $0x30] sm:$0xff]
        %v448 = vld [vmem:[%s275 + $0x38] sm:$0xff]
        %v449 = vld [vmem:[%s275 + $0x40] sm:$0xff]
        %v450 = vld [vmem:[%s275 + $0x48] sm:$0xff]
        %v451 = vld [vmem:[%s275 + $0x50] sm:$0xff]
        %v452 = vld [vmem:[%s275 + $0x58] sm:$0xff]
        %v453 = vld [vmem:[%s275 + $0x60] sm:$0xff]
        %v454 = vld [vmem:[%s275 + $0x68] sm:$0xff]
        %v455 = vld [vmem:[%s275 + $0x70] sm:$0xff]
        %v456 = vld [vmem:[%s275 + $0x78] sm:$0xff]
        %v457 = vld [vmem:[%s275 + $0x80] sm:$0xff]
        %v458 = vld [vmem:[%s275 + $0x88] sm:$0xff]
        %v459 = vld [vmem:[%s275 + $0x90] sm:$0xff]
        %v460 = vld [vmem:[%s275 + $0x98] sm:$0xff]
        %v461 = vld [vmem:[%s275 + $0xa0] sm:$0xff]
        %v462 = vld [vmem:[%s275 + $0xa8] sm:$0xff]
        %v463 = vld [vmem:[%s275 + $0xb0] sm:$0xff]
        %v464 = vld [vmem:[%s275 + $0xb8] sm:$0xff]
        %v465 = vld [vmem:[%s275 + $0xc0] sm:$0xff]
        %v466 = vld [vmem:[%s275 + $0xc8] sm:$0xff]
        %v467 = vld [vmem:[%s275 + $0xd0] sm:$0xff]
        %v468 = vld [vmem:[%s275 + $0xd8] sm:$0xff]
        %v469 = vld [vmem:[%s275 + $0xe0] sm:$0xff]
        %v470 = vld [vmem:[%s275 + $0xe8] sm:$0xff]
        %v471 = vld [vmem:[%s275 + $0xf0] sm:$0xff]
        %v472 = vld [vmem:[%s275 + $0xf8] sm:$0xff]
        %v473 = vld [vmem:[%s344] sm:$0xf]
        %v474 = vld [vmem:[%s344 + $0x4] sm:$0xf]
        %v475 = vld [vmem:[%s344 + $0x8] sm:$0xf]
        %v476 = vld [vmem:[%s344 + $0xc] sm:$0xf]
        %v477 = vld [vmem:[%s344 + $0x10] sm:$0xf]
        %v478 = vld [vmem:[%s344 + $0x14] sm:$0xf]
        %v479 = vld [vmem:[%s344 + $0x18] sm:$0xf]
        %v480 = vld [vmem:[%s344 + $0x1c] sm:$0xf]
        %v481 = vld [vmem:[%s344 + $0x20] sm:$0xf]
        %v482 = vld [vmem:[%s344 + $0x24] sm:$0xf]
        %v483 = vld [vmem:[%s344 + $0x28] sm:$0xf]
        %v484 = vld [vmem:[%s344 + $0x2c] sm:$0xf]
        %v485 = vld [vmem:[%s344 + $0x30] sm:$0xf]
        %v486 = vld [vmem:[%s344 + $0x34] sm:$0xf]
        %v487 = vld [vmem:[%s344 + $0x38] sm:$0xf]
        %v488 = vld [vmem:[%s344 + $0x3c] sm:$0xf]
        %v489 = vld [vmem:[%s344 + $0x40] sm:$0xf]
        %v490 = vld [vmem:[%s344 + $0x44] sm:$0xf]
        %v491 = vld [vmem:[%s344 + $0x48] sm:$0xf]
        %v492 = vld [vmem:[%s344 + $0x4c] sm:$0xf]
        %v493 = vld [vmem:[%s344 + $0x50] sm:$0xf]
        %v494 = vld [vmem:[%s344 + $0x54] sm:$0xf]
        %v495 = vld [vmem:[%s344 + $0x58] sm:$0xf]
        %v496 = vld [vmem:[%s344 + $0x5c] sm:$0xf]
        %v497 = vld [vmem:[%s344 + $0x60] sm:$0xf]
        %v498 = vld [vmem:[%s344 + $0x64] sm:$0xf]
        %v499 = vld [vmem:[%s344 + $0x68] sm:$0xf]
        %v500 = vld [vmem:[%s344 + $0x6c] sm:$0xf]
        %v501 = vld [vmem:[%s344 + $0x70] sm:$0xf]
        %v502 = vld [vmem:[%s344 + $0x74] sm:$0xf]
        %v503 = vld [vmem:[%s344 + $0x78] sm:$0xf]
        %v504 = vld [vmem:[%s344 + $0x7c] sm:$0xf]
        %v537 = vunpack.c.l.b16 %v441
        %v538 = vunpack.c.h.b16 %v441
        %v539 = vunpack.c.l.b16 %v442
        %v540 = vunpack.c.h.b16 %v442
        %v541 = vunpack.c.l.b16 %v443
        %v542 = vunpack.c.h.b16 %v443
        %v543 = vunpack.c.l.b16 %v444
        %v544 = vunpack.c.h.b16 %v444
        %v545 = vunpack.c.l.b16 %v445
        %v546 = vunpack.c.h.b16 %v445
        %v547 = vunpack.c.l.b16 %v446
        %v548 = vunpack.c.h.b16 %v446
        %v549 = vunpack.c.l.b16 %v447
        %v550 = vunpack.c.h.b16 %v447
        %v551 = vunpack.c.l.b16 %v448
        %v552 = vunpack.c.h.b16 %v448
        %v553 = vunpack.c.l.b16 %v449
        %v554 = vunpack.c.h.b16 %v449
        %v555 = vunpack.c.l.b16 %v450
        %v556 = vunpack.c.h.b16 %v450
        %v557 = vunpack.c.l.b16 %v451
        %v558 = vunpack.c.h.b16 %v451
        %v559 = vunpack.c.l.b16 %v452
        %v560 = vunpack.c.h.b16 %v452
        %v561 = vunpack.c.l.b16 %v453
        %v562 = vunpack.c.h.b16 %v453
        %v563 = vunpack.c.l.b16 %v454
        %v564 = vunpack.c.h.b16 %v454
        %v565 = vunpack.c.l.b16 %v455
        %v566 = vunpack.c.h.b16 %v455
        %v567 = vunpack.c.l.b16 %v456
        %v568 = vunpack.c.h.b16 %v456
        %v569 = vunpack.c.l.b16 %v457
        %v570 = vunpack.c.h.b16 %v457
        %v571 = vunpack.c.l.b16 %v458
        %v572 = vunpack.c.h.b16 %v458
        %v573 = vunpack.c.l.b16 %v459
        %v574 = vunpack.c.h.b16 %v459
        %v575 = vunpack.c.l.b16 %v460
        %v576 = vunpack.c.h.b16 %v460
        %v577 = vunpack.c.l.b16 %v461
        %v578 = vunpack.c.h.b16 %v461
        %v579 = vunpack.c.l.b16 %v462
        %v580 = vunpack.c.h.b16 %v462
        %v581 = vunpack.c.l.b16 %v463
        %v582 = vunpack.c.h.b16 %v463
        %v583 = vunpack.c.l.b16 %v464
        %v584 = vunpack.c.h.b16 %v464
        %v585 = vunpack.c.l.b16 %v465
        %v586 = vunpack.c.h.b16 %v465
        %v587 = vunpack.c.l.b16 %v466
        %v588 = vunpack.c.h.b16 %v466
        %v589 = vunpack.c.l.b16 %v467
        %v590 = vunpack.c.h.b16 %v467
        %v591 = vunpack.c.l.b16 %v468
        %v592 = vunpack.c.h.b16 %v468
        %v593 = vunpack.c.l.b16 %v469
        %v594 = vunpack.c.h.b16 %v469
        %v595 = vunpack.c.l.b16 %v470
        %v596 = vunpack.c.h.b16 %v470
        %v597 = vunpack.c.l.b16 %v471
        %v598 = vunpack.c.h.b16 %v471
        %v599 = vunpack.c.l.b16 %v472
        %v600 = vunpack.c.h.b16 %v472
        %v601 = vpack.c.b16 %v539, %v537
        %v602 = vpack.c.b16 %v540, %v538
        %v603 = vpack.c.b16 %v543, %v541
        %v604 = vpack.c.b16 %v544, %v542
        %v605 = vpack.c.b16 %v547, %v545
        %v606 = vpack.c.b16 %v548, %v546
        %v607 = vpack.c.b16 %v551, %v549
        %v608 = vpack.c.b16 %v552, %v550
        %v609 = vpack.c.b16 %v555, %v553
        %v610 = vpack.c.b16 %v556, %v554
        %v611 = vpack.c.b16 %v559, %v557
        %v612 = vpack.c.b16 %v560, %v558
        %v613 = vpack.c.b16 %v563, %v561
        %v614 = vpack.c.b16 %v564, %v562
        %v615 = vpack.c.b16 %v567, %v565
        %v616 = vpack.c.b16 %v568, %v566
        %v617 = vpack.c.b16 %v571, %v569
        %v618 = vpack.c.b16 %v572, %v570
        %v619 = vpack.c.b16 %v575, %v573
        %v620 = vpack.c.b16 %v576, %v574
        %v621 = vpack.c.b16 %v579, %v577
        %v622 = vpack.c.b16 %v580, %v578
        %v623 = vpack.c.b16 %v583, %v581
        %v624 = vpack.c.b16 %v584, %v582
        %v625 = vpack.c.b16 %v587, %v585
        %v626 = vpack.c.b16 %v588, %v586
        %v627 = vpack.c.b16 %v591, %v589
        %v628 = vpack.c.b16 %v592, %v590
        %v629 = vpack.c.b16 %v595, %v593
        %v630 = vpack.c.b16 %v596, %v594
        %v631 = vpack.c.b16 %v599, %v597
        %v632 = vpack.c.b16 %v600, %v598
        %v697 = vunpack.c.l.b16 %v473
        %v698 = vunpack.c.l.b16 %v474
        %v699 = vunpack.c.l.b16 %v475
        %v700 = vunpack.c.l.b16 %v476
        %v701 = vunpack.c.l.b16 %v477
        %v702 = vunpack.c.l.b16 %v478
        %v703 = vunpack.c.l.b16 %v479
        %v704 = vunpack.c.l.b16 %v480
        %v705 = vunpack.c.l.b16 %v481
        %v706 = vunpack.c.l.b16 %v482
        %v707 = vunpack.c.l.b16 %v483
        %v708 = vunpack.c.l.b16 %v484
        %v709 = vunpack.c.l.b16 %v485
        %v710 = vunpack.c.l.b16 %v486
        %v711 = vunpack.c.l.b16 %v487
        %v712 = vunpack.c.l.b16 %v488
        %v713 = vunpack.c.l.b16 %v489
        %v714 = vunpack.c.l.b16 %v490
        %v715 = vunpack.c.l.b16 %v491
        %v716 = vunpack.c.l.b16 %v492
        %v717 = vunpack.c.l.b16 %v493
        %v718 = vunpack.c.l.b16 %v494
        %v719 = vunpack.c.l.b16 %v495
        %v720 = vunpack.c.l.b16 %v496
        %v721 = vunpack.c.l.b16 %v497
        %v722 = vunpack.c.l.b16 %v498
        %v723 = vunpack.c.l.b16 %v499
        %v724 = vunpack.c.l.b16 %v500
        %v725 = vunpack.c.l.b16 %v501
        %v726 = vunpack.c.l.b16 %v502
        %v727 = vunpack.c.l.b16 %v503
        %v728 = vunpack.c.l.b16 %v504
        %v729 = vpack.c.b16 %v698, %v697
        %v730 = vpack.c.b16 %v700, %v699
        %v731 = vpack.c.b16 %v702, %v701
        %v732 = vpack.c.b16 %v704, %v703
        %v733 = vpack.c.b16 %v706, %v705
        %v734 = vpack.c.b16 %v708, %v707
        %v735 = vpack.c.b16 %v710, %v709
        %v736 = vpack.c.b16 %v712, %v711
        %v737 = vpack.c.b16 %v714, %v713
        %v738 = vpack.c.b16 %v716, %v715
        %v739 = vpack.c.b16 %v718, %v717
        %v740 = vpack.c.b16 %v720, %v719
        %v741 = vpack.c.b16 %v722, %v721
        %v742 = vpack.c.b16 %v724, %v723
        %v743 = vpack.c.b16 %v726, %v725
        %v744 = vpack.c.b16 %v728, %v727
        %761 = vmatprep.subr.bf16.mxu0 0
        %762 = vmatpush1.bf16.msra.mxu0 %v729
        %763 = vmatprep.subr.bf16.mxu0 0
        %764 = vmatpush1.bf16.msra.mxu0 %v730
        %765 = vmatprep.subr.bf16.mxu0 0
        %766 = vmatpush1.bf16.msra.mxu0 %v731
        %767 = vmatprep.subr.bf16.mxu0 0
        %768 = vmatpush1.bf16.msra.mxu0 %v732
        %769 = vmatprep.subr.bf16.mxu0 0
        %770 = vmatpush1.bf16.msra.mxu0 %v733
        %771 = vmatprep.subr.bf16.mxu0 0
        %772 = vmatpush1.bf16.msra.mxu0 %v734
        %773 = vmatprep.subr.bf16.mxu0 0
        %774 = vmatpush1.bf16.msra.mxu0 %v735
        %775 = vmatprep.subr.bf16.mxu0 0
        %776 = vmatpush1.bf16.msra.mxu0 %v736
        %777 = vmatprep.subr.bf16.mxu0 0
        %778 = vmatpush1.bf16.msra.mxu0 %v737
        %779 = vmatprep.subr.bf16.mxu0 0
        %780 = vmatpush1.bf16.msra.mxu0 %v738
        %781 = vmatprep.subr.bf16.mxu0 0
        %782 = vmatpush1.bf16.msra.mxu0 %v739
        %783 = vmatprep.subr.bf16.mxu0 0
        %784 = vmatpush1.bf16.msra.mxu0 %v740
        %785 = vmatprep.subr.bf16.mxu0 0
        %786 = vmatpush1.bf16.msra.mxu0 %v741
        %787 = vmatprep.subr.bf16.mxu0 0
        %788 = vmatpush1.bf16.msra.mxu0 %v742
        %789 = vmatprep.subr.bf16.mxu0 0
        %790 = vmatpush1.bf16.msra.mxu0 %v743
        %791 = vmatprep.subr.bf16.mxu0 0
        %792 = vmatpush1.bf16.msra.mxu0 %v744
        %793 = vmatprep.mubr.bf16.mxu0 %v602
        %794 = vmatmul.mubr.bf16.gmra.mrb[0].mxu0 %v601
        %v795 = vpop.f32.mrb[0].mxu0
        %v796 = vadd.f32 0.0, %v795
        %v797 = vpop.f32.mrb[0].mxu0
        %v798 = vpop.f32.mrb[0].mxu0
        %v799 = vadd.f32 0.0, %v798
        %v800 = vpop.f32.mrb[0].mxu0
        %801 = vmatprep.mubr.bf16.mxu0 %v604
        %802 = vmatmul.mubr.bf16.gmra.mrb[0].mxu0 %v603
        %v803 = vpop.f32.mrb[0].mxu0
        %v804 = vadd.f32 0.0, %v803
        %v805 = vpop.f32.mrb[0].mxu0
        %v806 = vpop.f32.mrb[0].mxu0
        %v807 = vadd.f32 0.0, %v806
        %v808 = vpop.f32.mrb[0].mxu0
        %809 = vmatprep.mubr.bf16.mxu0 %v606
        %810 = vmatmul.mubr.bf16.gmra.mrb[0].mxu0 %v605
        %v811 = vpop.f32.mrb[0].mxu0
        %v812 = vadd.f32 0.0, %v811
        %v813 = vpop.f32.mrb[0].mxu0
        %v814 = vpop.f32.mrb[0].mxu0
        %v815 = vadd.f32 0.0, %v814
        %v816 = vpop.f32.mrb[0].mxu0
        %817 = vmatprep.mubr.bf16.mxu0 %v608
        %818 = vmatmul.mubr.bf16.gmra.mrb[0].mxu0 %v607
        %v819 = vpop.f32.mrb[0].mxu0
        %v820 = vadd.f32 0.0, %v819
        %v821 = vpop.f32.mrb[0].mxu0
        %v822 = vpop.f32.mrb[0].mxu0
        %v823 = vadd.f32 0.0, %v822
        %v824 = vpop.f32.mrb[0].mxu0
        %825 = vmatprep.mubr.bf16.mxu0 %v610
        %826 = vmatmul.mubr.bf16.gmra.mrb[0].mxu0 %v609
        %v827 = vpop.f32.mrb[0].mxu0
        %v828 = vadd.f32 0.0, %v827
        %v829 = vpop.f32.mrb[0].mxu0
        %v830 = vpop.f32.mrb[0].mxu0
        %v831 = vadd.f32 0.0, %v830
        %v832 = vpop.f32.mrb[0].mxu0
        %833 = vmatprep.mubr.bf16.mxu0 %v612
        %834 = vmatmul.mubr.bf16.gmra.mrb[0].mxu0 %v611
        %v835 = vpop.f32.mrb[0].mxu0
        %v836 = vadd.f32 0.0, %v835
        %v837 = vpop.f32.mrb[0].mxu0
        %v838 = vpop.f32.mrb[0].mxu0
        %v839 = vadd.f32 0.0, %v838
        %v840 = vpop.f32.mrb[0].mxu0
        %841 = vmatprep.mubr.bf16.mxu0 %v614
        %842 = vmatmul.mubr.bf16.gmra.mrb[0].mxu0 %v613
        %v843 = vpop.f32.mrb[0].mxu0
        %v844 = vadd.f32 0.0, %v843
        %v845 = vpop.f32.mrb[0].mxu0
        %v846 = vpop.f32.mrb[0].mxu0
        %v847 = vadd.f32 0.0, %v846
        %v848 = vpop.f32.mrb[0].mxu0
        %849 = vmatprep.mubr.bf16.mxu0 %v616
        %850 = vmatmul.mubr.bf16.gmra.mrb[0].mxu0 %v615
        %v851 = vpop.f32.mrb[0].mxu0
        %v852 = vadd.f32 0.0, %v851
        %v853 = vpop.f32.mrb[0].mxu0
        %v854 = vpop.f32.mrb[0].mxu0
        %v855 = vadd.f32 0.0, %v854
        %v856 = vpop.f32.mrb[0].mxu0
        %857 = vmatprep.mubr.bf16.mxu0 %v618
        %858 = vmatmul.mubr.bf16.gmra.mrb[0].mxu0 %v617
        %v859 = vpop.f32.mrb[0].mxu0
        %v860 = vadd.f32 0.0, %v859
        %v861 = vpop.f32.mrb[0].mxu0
        %v862 = vpop.f32.mrb[0].mxu0
        %v863 = vadd.f32 0.0, %v862
        %v864 = vpop.f32.mrb[0].mxu0
        %865 = vmatprep.mubr.bf16.mxu0 %v620
        %866 = vmatmul.mubr.bf16.gmra.mrb[0].mxu0 %v619
        %v867 = vpop.f32.mrb[0].mxu0
        %v868 = vadd.f32 0.0, %v867
        %v869 = vpop.f32.mrb[0].mxu0
        %v870 = vpop.f32.mrb[0].mxu0
        %v871 = vadd.f32 0.0, %v870
        %v872 = vpop.f32.mrb[0].mxu0
        %873 = vmatprep.mubr.bf16.mxu0 %v622
        %874 = vmatmul.mubr.bf16.gmra.mrb[0].mxu0 %v621
        %v875 = vpop.f32.mrb[0].mxu0
        %v876 = vadd.f32 0.0, %v875
        %v877 = vpop.f32.mrb[0].mxu0
        %v878 = vpop.f32.mrb[0].mxu0
        %v879 = vadd.f32 0.0, %v878
        %v880 = vpop.f32.mrb[0].mxu0
        %881 = vmatprep.mubr.bf16.mxu0 %v624
        %882 = vmatmul.mubr.bf16.gmra.mrb[0].mxu0 %v623
        %v883 = vpop.f32.mrb[0].mxu0
        %v884 = vadd.f32 0.0, %v883
        %v885 = vpop.f32.mrb[0].mxu0
        %v886 = vpop.f32.mrb[0].mxu0
        %v887 = vadd.f32 0.0, %v886
        %v888 = vpop.f32.mrb[0].mxu0
        %889 = vmatprep.mubr.bf16.mxu0 %v626
        %890 = vmatmul.mubr.bf16.gmra.mrb[0].mxu0 %v625
        %v891 = vpop.f32.mrb[0].mxu0
        %v892 = vadd.f32 0.0, %v891
        %v893 = vpop.f32.mrb[0].mxu0
        %v894 = vpop.f32.mrb[0].mxu0
        %v895 = vadd.f32 0.0, %v894
        %v896 = vpop.f32.mrb[0].mxu0
        %897 = vmatprep.mubr.bf16.mxu0 %v628
        %898 = vmatmul.mubr.bf16.gmra.mrb[0].mxu0 %v627
        %v899 = vpop.f32.mrb[0].mxu0
        %v900 = vadd.f32 0.0, %v899
        %v901 = vpop.f32.mrb[0].mxu0
        %v902 = vpop.f32.mrb[0].mxu0
        %v903 = vadd.f32 0.0, %v902
        %v904 = vpop.f32.mrb[0].mxu0
        %905 = vmatprep.mubr.bf16.mxu0 %v630
        %906 = vmatmul.mubr.bf16.gmra.mrb[0].mxu0 %v629
        %v907 = vpop.f32.mrb[0].mxu0
        %v908 = vadd.f32 0.0, %v907
        %v909 = vpop.f32.mrb[0].mxu0
        %v910 = vpop.f32.mrb[0].mxu0
        %v911 = vadd.f32 0.0, %v910
        %v912 = vpop.f32.mrb[0].mxu0
        %913 = vmatprep.mubr.bf16.mxu0 %v632
        %914 = vmatmul.mubr.bf16.gmra.mrb[0].mxu0 %v631
        %v915 = vpop.f32.mrb[0].mxu0
        %v916 = vadd.f32 0.0, %v915
        %v917 = vpop.f32.mrb[0].mxu0
        %v918 = vpop.f32.mrb[0].mxu0
        %v919 = vadd.f32 0.0, %v918
        %v920 = vpop.f32.mrb[0].mxu0
        %921 = vdwg.mxu0
        %v922 = vadd.f32 %v409, %v796
        %v923 = vadd.f32 %v410, %v799
        %v924 = vadd.f32 %v411, %v804
        %v925 = vadd.f32 %v412, %v807
        %v926 = vadd.f32 %v413, %v812
        %v927 = vadd.f32 %v414, %v815
        %v928 = vadd.f32 %v415, %v820
        %v929 = vadd.f32 %v416, %v823
        %v930 = vadd.f32 %v417, %v828
        %v931 = vadd.f32 %v418, %v831
        %v932 = vadd.f32 %v419, %v836
        %v933 = vadd.f32 %v420, %v839
        %v934 = vadd.f32 %v421, %v844
        %v935 = vadd.f32 %v422, %v847
        %v936 = vadd.f32 %v423, %v852
        %v937 = vadd.f32 %v424, %v855
        %v938 = vadd.f32 %v425, %v860
        %v939 = vadd.f32 %v426, %v863
        %v940 = vadd.f32 %v427, %v868
        %v941 = vadd.f32 %v428, %v871
        %v942 = vadd.f32 %v429, %v876
        %v943 = vadd.f32 %v430, %v879
        %v944 = vadd.f32 %v431, %v884
        %v945 = vadd.f32 %v432, %v887
        %v946 = vadd.f32 %v433, %v892
        %v947 = vadd.f32 %v434, %v895
        %v948 = vadd.f32 %v435, %v900
        %v949 = vadd.f32 %v436, %v903
        %v950 = vadd.f32 %v437, %v908
        %v951 = vadd.f32 %v438, %v911
        %v952 = vadd.f32 %v439, %v916
        %v953 = vadd.f32 %v440, %v919
        %vm954 = vcmask 523264
        %955 = vst.msk [vmem:[#allocation2] sm:$0xff] %vm954, %v922
        %956 = vst.msk [vmem:[#allocation2 + $0x8] sm:$0xff] %vm954, %v923
        %957 = vst.msk [vmem:[#allocation2 + $0x10] sm:$0xff] %vm954, %v924
        %958 = vst.msk [vmem:[#allocation2 + $0x18] sm:$0xff] %vm954, %v925
        %959 = vst.msk [vmem:[#allocation2 + $0x20] sm:$0xff] %vm954, %v926
        %960 = vst.msk [vmem:[#allocation2 + $0x28] sm:$0xff] %vm954, %v927
        %961 = vst.msk [vmem:[#allocation2 + $0x30] sm:$0xff] %vm954, %v928
        %962 = vst.msk [vmem:[#allocation2 + $0x38] sm:$0xff] %vm954, %v929
        %963 = vst.msk [vmem:[#allocation2 + $0x40] sm:$0xff] %vm954, %v930
        %964 = vst.msk [vmem:[#allocation2 + $0x48] sm:$0xff] %vm954, %v931
        %965 = vst.msk [vmem:[#allocation2 + $0x50] sm:$0xff] %vm954, %v932
        %966 = vst.msk [vmem:[#allocation2 + $0x58] sm:$0xff] %vm954, %v933
        %967 = vst.msk [vmem:[#allocation2 + $0x60] sm:$0xff] %vm954, %v934
        %968 = vst.msk [vmem:[#allocation2 + $0x68] sm:$0xff] %vm954, %v935
        %969 = vst.msk [vmem:[#allocation2 + $0x70] sm:$0xff] %vm954, %v936
        %970 = vst.msk [vmem:[#allocation2 + $0x78] sm:$0xff] %vm954, %v937
        %971 = vst.msk [vmem:[#allocation2 + $0x80] sm:$0xff] %vm954, %v938
        %972 = vst.msk [vmem:[#allocation2 + $0x88] sm:$0xff] %vm954, %v939
        %973 = vst.msk [vmem:[#allocation2 + $0x90] sm:$0xff] %vm954, %v940
        %974 = vst.msk [vmem:[#allocation2 + $0x98] sm:$0xff] %vm954, %v941
        %975 = vst.msk [vmem:[#allocation2 + $0xa0] sm:$0xff] %vm954, %v942
        %976 = vst.msk [vmem:[#allocation2 + $0xa8] sm:$0xff] %vm954, %v943
        %977 = vst.msk [vmem:[#allocation2 + $0xb0] sm:$0xff] %vm954, %v944
        %978 = vst.msk [vmem:[#allocation2 + $0xb8] sm:$0xff] %vm954, %v945
        %979 = vst.msk [vmem:[#allocation2 + $0xc0] sm:$0xff] %vm954, %v946
        %980 = vst.msk [vmem:[#allocation2 + $0xc8] sm:$0xff] %vm954, %v947
        %981 = vst.msk [vmem:[#allocation2 + $0xd0] sm:$0xff] %vm954, %v948
        %982 = vst.msk [vmem:[#allocation2 + $0xd8] sm:$0xff] %vm954, %v949
        %983 = vst.msk [vmem:[#allocation2 + $0xe0] sm:$0xff] %vm954, %v950
        %984 = vst.msk [vmem:[#allocation2 + $0xe8] sm:$0xff] %vm954, %v951
        %985 = vst.msk [vmem:[#allocation2 + $0xf0] sm:$0xff] %vm954, %v952
        %986 = vst.msk [vmem:[#allocation2 + $0xf8] sm:$0xff] %vm954, %v953
        // Predicated region
        $region45: #{tpu_custom_call.1} parent=35 // pred_check
          %p987 = pneg %p372
        $region46: #{tpu_custom_call.1} parent=35 // pred_check_branch
          %989 = sbr.rel (%p987) target = $region48
        $region47: #{tpu_custom_call.1} parent=35 // pred_region
          %v990 = vld [vmem:[#allocation2] sm:$0xff]
          %v991 = vld [vmem:[#allocation2 + $0x8] sm:$0xff]
          %v992 = vld [vmem:[#allocation2 + $0x10] sm:$0xff]
          %v993 = vld [vmem:[#allocation2 + $0x18] sm:$0xff]
          %v994 = vld [vmem:[#allocation2 + $0x20] sm:$0xff]
          %v995 = vld [vmem:[#allocation2 + $0x28] sm:$0xff]
          %v996 = vld [vmem:[#allocation2 + $0x30] sm:$0xff]
          %v997 = vld [vmem:[#allocation2 + $0x38] sm:$0xff]
          %v998 = vld [vmem:[#allocation2 + $0x40] sm:$0xff]
          %v999 = vld [vmem:[#allocation2 + $0x48] sm:$0xff]
          %v1000 = vld [vmem:[#allocation2 + $0x50] sm:$0xff]
          %v1001 = vld [vmem:[#allocation2 + $0x58] sm:$0xff]
          %v1002 = vld [vmem:[#allocation2 + $0x60] sm:$0xff]
          %v1003 = vld [vmem:[#allocation2 + $0x68] sm:$0xff]
          %v1004 = vld [vmem:[#allocation2 + $0x70] sm:$0xff]
          %v1005 = vld [vmem:[#allocation2 + $0x78] sm:$0xff]
          %v1006 = vld [vmem:[#allocation2 + $0x80] sm:$0xff]
          %v1007 = vld [vmem:[#allocation2 + $0x88] sm:$0xff]
          %v1008 = vld [vmem:[#allocation2 + $0x90] sm:$0xff]
          %v1009 = vld [vmem:[#allocation2 + $0x98] sm:$0xff]
          %v1010 = vld [vmem:[#allocation2 + $0xa0] sm:$0xff]
          %v1011 = vld [vmem:[#allocation2 + $0xa8] sm:$0xff]
          %v1012 = vld [vmem:[#allocation2 + $0xb0] sm:$0xff]
          %v1013 = vld [vmem:[#allocation2 + $0xb8] sm:$0xff]
          %v1014 = vld [vmem:[#allocation2 + $0xc0] sm:$0xff]
          %v1015 = vld [vmem:[#allocation2 + $0xc8] sm:$0xff]
          %v1016 = vld [vmem:[#allocation2 + $0xd0] sm:$0xff]
          %v1017 = vld [vmem:[#allocation2 + $0xd8] sm:$0xff]
          %v1018 = vld [vmem:[#allocation2 + $0xe0] sm:$0xff]
          %v1019 = vld [vmem:[#allocation2 + $0xe8] sm:$0xff]
          %v1020 = vld [vmem:[#allocation2 + $0xf0] sm:$0xff]
          %v1021 = vld [vmem:[#allocation2 + $0xf8] sm:$0xff]
          %v1022 = vld [vmem:[%s351] sm:$0x1]
          %v1024 = vlaneseq
          %v1025 = vshrl.u32 %v1024, 7
          %v1026 = vsub.s32 0, %v1025
          %v1027 = vrot.slane %v1022, %v1026
          %v1029 = vmul.f32 %v990, %v1027
          %v1030 = vmul.f32 %v991, %v1027
          %v1031 = vmul.f32 %v992, %v1027
          %v1032 = vmul.f32 %v993, %v1027
          %v1033 = vmul.f32 %v994, %v1027
          %v1034 = vmul.f32 %v995, %v1027
          %v1035 = vmul.f32 %v996, %v1027
          %v1036 = vmul.f32 %v997, %v1027
          %v1037 = vmul.f32 %v998, %v1027
          %v1038 = vmul.f32 %v999, %v1027
          %v1039 = vmul.f32 %v1000, %v1027
          %v1040 = vmul.f32 %v1001, %v1027
          %v1041 = vmul.f32 %v1002, %v1027
          %v1042 = vmul.f32 %v1003, %v1027
          %v1043 = vmul.f32 %v1004, %v1027
          %v1044 = vmul.f32 %v1005, %v1027
          %v1045 = vmul.f32 %v1006, %v1027
          %v1046 = vmul.f32 %v1007, %v1027
          %v1047 = vmul.f32 %v1008, %v1027
          %v1048 = vmul.f32 %v1009, %v1027
          %v1049 = vmul.f32 %v1010, %v1027
          %v1050 = vmul.f32 %v1011, %v1027
          %v1051 = vmul.f32 %v1012, %v1027
          %v1052 = vmul.f32 %v1013, %v1027
          %v1053 = vmul.f32 %v1014, %v1027
          %v1054 = vmul.f32 %v1015, %v1027
          %v1055 = vmul.f32 %v1016, %v1027
          %v1056 = vmul.f32 %v1017, %v1027
          %v1057 = vmul.f32 %v1018, %v1027
          %v1058 = vmul.f32 %v1019, %v1027
          %v1059 = vmul.f32 %v1020, %v1027
          %v1060 = vmul.f32 %v1021, %v1027
          %v1061 = vld [vmem:[%s357] sm:$0x1]
          %v1063 = vlaneseq
          %v1064 = vshrl.u32 %v1063, 7
          %v1065 = vsub.s32 0, %v1064
          %v1066 = vrot.slane %v1061, %v1065
          %v1068 = vadd.f32 %v1029, %v1066
          %v1069 = vadd.f32 %v1030, %v1066
          %v1070 = vadd.f32 %v1031, %v1066
          %v1071 = vadd.f32 %v1032, %v1066
          %v1072 = vadd.f32 %v1033, %v1066
          %v1073 = vadd.f32 %v1034, %v1066
          %v1074 = vadd.f32 %v1035, %v1066
          %v1075 = vadd.f32 %v1036, %v1066
          %v1076 = vadd.f32 %v1037, %v1066
          %v1077 = vadd.f32 %v1038, %v1066
          %v1078 = vadd.f32 %v1039, %v1066
          %v1079 = vadd.f32 %v1040, %v1066
          %v1080 = vadd.f32 %v1041, %v1066
          %v1081 = vadd.f32 %v1042, %v1066
          %v1082 = vadd.f32 %v1043, %v1066
          %v1083 = vadd.f32 %v1044, %v1066
          %v1084 = vadd.f32 %v1045, %v1066
          %v1085 = vadd.f32 %v1046, %v1066
          %v1086 = vadd.f32 %v1047, %v1066
          %v1087 = vadd.f32 %v1048, %v1066
          %v1088 = vadd.f32 %v1049, %v1066
          %v1089 = vadd.f32 %v1050, %v1066
          %v1090 = vadd.f32 %v1051, %v1066
          %v1091 = vadd.f32 %v1052, %v1066
          %v1092 = vadd.f32 %v1053, %v1066
          %v1093 = vadd.f32 %v1054, %v1066
          %v1094 = vadd.f32 %v1055, %v1066
          %v1095 = vadd.f32 %v1056, %v1066
          %v1096 = vadd.f32 %v1057, %v1066
          %v1097 = vadd.f32 %v1058, %v1066
          %v1098 = vadd.f32 %v1059, %v1066
          %v1099 = vadd.f32 %v1060, %v1066
          %v1100 = vmax.f32 %v1068, 0.0
          %v1101 = vmax.f32 %v1069, 0.0
          %v1102 = vmax.f32 %v1070, 0.0
          %v1103 = vmax.f32 %v1071, 0.0
          %v1104 = vmax.f32 %v1072, 0.0
          %v1105 = vmax.f32 %v1073, 0.0
          %v1106 = vmax.f32 %v1074, 0.0
          %v1107 = vmax.f32 %v1075, 0.0
          %v1108 = vmax.f32 %v1076, 0.0
          %v1109 = vmax.f32 %v1077, 0.0
          %v1110 = vmax.f32 %v1078, 0.0
          %v1111 = vmax.f32 %v1079, 0.0
          %v1112 = vmax.f32 %v1080, 0.0
          %v1113 = vmax.f32 %v1081, 0.0
          %v1114 = vmax.f32 %v1082, 0.0
          %v1115 = vmax.f32 %v1083, 0.0
          %v1116 = vmax.f32 %v1084, 0.0
          %v1117 = vmax.f32 %v1085, 0.0
          %v1118 = vmax.f32 %v1086, 0.0
          %v1119 = vmax.f32 %v1087, 0.0
          %v1120 = vmax.f32 %v1088, 0.0
          %v1121 = vmax.f32 %v1089, 0.0
          %v1122 = vmax.f32 %v1090, 0.0
          %v1123 = vmax.f32 %v1091, 0.0
          %v1124 = vmax.f32 %v1092, 0.0
          %v1125 = vmax.f32 %v1093, 0.0
          %v1126 = vmax.f32 %v1094, 0.0
          %v1127 = vmax.f32 %v1095, 0.0
          %v1128 = vmax.f32 %v1096, 0.0
          %v1129 = vmax.f32 %v1097, 0.0
          %v1130 = vmax.f32 %v1098, 0.0
          %v1131 = vmax.f32 %v1099, 0.0
          %1132 = vst.msk [vmem:[%s369] sm:$0xff] %vm954, %v1100
          %1133 = vst.msk [vmem:[%s369 + $0x8] sm:$0xff] %vm954, %v1101
          %1134 = vst.msk [vmem:[%s369 + $0x10] sm:$0xff] %vm954, %v1102
          %1135 = vst.msk [vmem:[%s369 + $0x18] sm:$0xff] %vm954, %v1103
          %1136 = vst.msk [vmem:[%s369 + $0x20] sm:$0xff] %vm954, %v1104
          %1137 = vst.msk [vmem:[%s369 + $0x28] sm:$0xff] %vm954, %v1105
          %1138 = vst.msk [vmem:[%s369 + $0x30] sm:$0xff] %vm954, %v1106
          %1139 = vst.msk [vmem:[%s369 + $0x38] sm:$0xff] %vm954, %v1107
          %1140 = vst.msk [vmem:[%s369 + $0x40] sm:$0xff] %vm954, %v1108
          %1141 = vst.msk [vmem:[%s369 + $0x48] sm:$0xff] %vm954, %v1109
          %1142 = vst.msk [vmem:[%s369 + $0x50] sm:$0xff] %vm954, %v1110
          %1143 = vst.msk [vmem:[%s369 + $0x58] sm:$0xff] %vm954, %v1111
          %1144 = vst.msk [vmem:[%s369 + $0x60] sm:$0xff] %vm954, %v1112
          %1145 = vst.msk [vmem:[%s369 + $0x68] sm:$0xff] %vm954, %v1113
          %1146 = vst.msk [vmem:[%s369 + $0x70] sm:$0xff] %vm954, %v1114
          %1147 = vst.msk [vmem:[%s369 + $0x78] sm:$0xff] %vm954, %v1115
          %1148 = vst.msk [vmem:[%s369 + $0x80] sm:$0xff] %vm954, %v1116
          %1149 = vst.msk [vmem:[%s369 + $0x88] sm:$0xff] %vm954, %v1117
          %1150 = vst.msk [vmem:[%s369 + $0x90] sm:$0xff] %vm954, %v1118
          %1151 = vst.msk [vmem:[%s369 + $0x98] sm:$0xff] %vm954, %v1119
          %1152 = vst.msk [vmem:[%s369 + $0xa0] sm:$0xff] %vm954, %v1120
          %1153 = vst.msk [vmem:[%s369 + $0xa8] sm:$0xff] %vm954, %v1121
          %1154 = vst.msk [vmem:[%s369 + $0xb0] sm:$0xff] %vm954, %v1122
          %1155 = vst.msk [vmem:[%s369 + $0xb8] sm:$0xff] %vm954, %v1123
          %1156 = vst.msk [vmem:[%s369 + $0xc0] sm:$0xff] %vm954, %v1124
          %1157 = vst.msk [vmem:[%s369 + $0xc8] sm:$0xff] %vm954, %v1125
          %1158 = vst.msk [vmem:[%s369 + $0xd0] sm:$0xff] %vm954, %v1126
          %1159 = vst.msk [vmem:[%s369 + $0xd8] sm:$0xff] %vm954, %v1127
          %1160 = vst.msk [vmem:[%s369 + $0xe0] sm:$0xff] %vm954, %v1128
          %1161 = vst.msk [vmem:[%s369 + $0xe8] sm:$0xff] %vm954, %v1129
          %1162 = vst.msk [vmem:[%s369 + $0xf0] sm:$0xff] %vm954, %v1130
          %1163 = vst.msk [vmem:[%s369 + $0xf8] sm:$0xff] %vm954, %v1131
        $region48: #{tpu_custom_call.1} parent=35 // pred_fallthru
          _
        %s1164 = smul.u32 32, %s25
        %p1165 = scmp.lt.s32.totalorder %s24, 1
        %s1166 = scalar_select %p1165, %s24, 1
        %p1167 = scmp.lt.s32.totalorder %s1164, 63
        %s1168 = scalar_select %p1167, %s1164, 63
        %p1169 = scmp.lt.s32.totalorder %s26, 0
        %s1170 = scalar_select %p1169, %s26, 0
        %s1171 = sadd.s32 %s1170, %s1168
        %s1172 = smul.addr %s1166, 64
        %s1173 = sadd.s32 %s1171, %s1172
        %s1174 = smul.addr %s1173, 8
        %s1175 = scalar_lea.vmem %s4, %s1174
        // Predicated region
        $region49: #{tpu_custom_call.1} parent=35 // pred_check
          %p1176 = pneg %p182
        $region50: #{tpu_custom_call.1} parent=35 // pred_check_branch
          %1178 = sbr.rel (%p1176) target = $region52
        $region51: #{tpu_custom_call.1} parent=35 // pred_region
          %s1179 = smul.u32 32, %s25
        $region52: #{tpu_custom_call.1} parent=35 // pred_fallthru
          _
      $region36: #{tpu_custom_call.1} parent=5 // pred_fallthru
        _
      %p1180 = scmp.le.s32.totalorder 2, %s13
      // Predicated region
      $region53: #{tpu_custom_call.1} parent=5 // pred_check
        %p1181 = pneg %p1180
      $region54: #{tpu_custom_call.1} parent=5 // pred_check_branch
        %1183 = sbr.rel (%p1181) target = $region56
      $region55: #{tpu_custom_call.1} parent=5 // pred_region
        %s1184 = ssub.s32 %s13, 2
        // Predicated region
        $region57: #{tpu_custom_call.1} parent=55 // pred_check
          %p1185 = pneg %p188
        $region58: #{tpu_custom_call.1} parent=55 // pred_check_branch
          %1187 = sbr.rel (%p1185) target = $region60
        $region59: #{tpu_custom_call.1} parent=55 // pred_region
          %s1188 = smul.u32 32, %s29
          %p1189 = scmp.lt.s32.totalorder %s28, 1
          %s1190 = scalar_select %p1189, %s28, 1
          %p1191 = scmp.lt.s32.totalorder %s1188, 63
          %s1192 = scalar_select %p1191, %s1188, 63
          %p1193 = scmp.lt.s32.totalorder %s30, 0
          %s1194 = scalar_select %p1193, %s30, 0
          %s1195 = sadd.s32 %s1194, %s1192
          %s1196 = smul.addr %s1190, 64
          %s1197 = sadd.s32 %s1195, %s1196
          %s1198 = smul.addr %s1197, 8
          %s1199 = scalar_lea.vmem %s4, %s1198
        $region60: #{tpu_custom_call.1} parent=55 // pred_fallthru
          _
      $region56: #{tpu_custom_call.1} parent=5 // pred_fallthru
        _
    $region6: #{tpu_custom_call.1} parent=1 // loop_footer
      %s17 = sadd.s32 1, %s13
    $region7: #{tpu_custom_call.1} parent=1 // loop_footer_branch
      %12 = sbr.rel target = $region3
    $region8: #{tpu_custom_call.1} parent=1 // loop_exit
      _
    %1200 = vsyncpa [#allocation4], 1
    %s1201 = scalar_lea.sflag [#allocation4], 1
    %1202 = vsyncpa %s1201, 1

</llo_original>
